<compile_context>
chip_gen: v7x
topology: tpu7x:2x2x1
jax: 0.10.0
libtpu: 0.0.40
codegen_flags: <defaults>
</compile_context>

<pallas_src>
import functools
import numpy as np
import jax
import jax.numpy as jnp
from jax import lax
from jax.experimental import pallas as pl
from jax.experimental.pallas import tpu as pltpu

OPENAI_CLIP_MEAN = (0.48145466, 0.4578275, 0.40821073)
OPENAI_CLIP_STD = (0.26862954, 0.26130258, 0.27577711)

SAMPLE_SIZE = 16                 # stands in for sample_size=224
EMBED_DIM = 64                   # image/text feature dim (embedding_dim*2 in module)
ADAPT_HID = EMBED_DIM // 2       # Adapter(c_in, reduction=2)
N_PROMPTS = 20                   # fixed 20-prompt set in the module
N_GROUPS = 4
GROUP_SIZE = 5
LOGIT_SCALE = float(np.exp(np.log(1.0 / 0.07)))   # clip_model.logit_scale.exp()
EPS = 1e-12


def uniqa_kernel(x_ref, wenc_ref, benc_ref, wa1_ref, wa2_ref, txt_ref,
                 gcomb_ref, sel_ref, out_ref):
    # ---- synthetic image encoder with CLIP normalization folded into W/bias ----
    img = jnp.dot(x_ref[...], wenc_ref[...],
                  preferred_element_type=jnp.float32) + benc_ref[...]        # (N, D)

    # ---- Adapter: Linear -> ReLU -> Linear -> ReLU, residual add ----
    h = jnp.maximum(jnp.dot(img.astype(jnp.bfloat16), wa1_ref[...],
                            preferred_element_type=jnp.float32), 0.0)        # (N, D/2)
    a = jnp.maximum(jnp.dot(h.astype(jnp.bfloat16), wa2_ref[...],
                            preferred_element_type=jnp.float32), 0.0)        # (N, D)
    img = img + a

    # ---- L2 normalize image features (text pre-normalized on host) ----
    img = img * lax.rsqrt(jnp.sum(img * img, axis=-1, keepdims=True) + EPS)

    # ---- logits: logit_scale already folded into txt_t (D, 20), bf16 operands ----
    logits = jnp.dot(img.astype(jnp.bfloat16), txt_ref[...],
                     preferred_element_type=jnp.float32)                     # (N, 20)

    # ---- grouped softmax over blocks of 5 prompts + MOS scoring ----
    # No max-subtract: unit-normalized operands + logit_scale~14.3 bound |logits|,
    # so exp() cannot overflow f32; the exp(-m) factor cancels in numer/denom.
    e = jnp.exp(logits)                                                      # (N, 20)
    # One fused (N,20)x(20,8) matmul gives [denom | numer] in a single vreg.
    ge = jnp.dot(e.astype(jnp.bfloat16), gcomb_ref[...],
                 preferred_element_type=jnp.float32)                         # (N, 8)
    denom = ge[:, :N_GROUPS]                                                 # (N, 4)
    numer = ge[:, N_GROUPS:]                                                 # (N, 4)
    inv = pl.reciprocal(denom, approx=True)
    inv = inv * (2.0 - denom * inv)          # one Newton step -> ~exact divide
    row = jnp.sum(numer * inv, axis=-1, keepdims=True)                       # (N, 1)

    # ---- per-image mean over crops & groups: 1/(4*sample_num) folded into sel ----
    # VPU broadcast-multiply + sublane reduce (no dim-0-contracting dot_general).
    out_ref[...] = jnp.sum(row * sel_ref[...], axis=0, keepdims=True)        # (1, B)


def _zero_map(ndim):
    return lambda i: (0,) * ndim


def score_crops_pallas(x_flat, prepared, sel):
    """Flattened crops (N, F) bf16 -> per-image scores (1, B), fully fused."""
    w_enc, b_enc, w_a1, w_a2, txt_t, g_comb = prepared
    B = sel.shape[1]

    inputs = (x_flat, w_enc, b_enc, w_a1, w_a2, txt_t, g_comb, sel)
    in_specs = [pl.BlockSpec(a.shape, _zero_map(a.ndim)) for a in inputs]
    out_specs = pl.BlockSpec((1, B), _zero_map(2))

    grid_spec = pltpu.PrefetchScalarGridSpec(
        num_scalar_prefetch=0,
        grid=(1,),
        in_specs=in_specs,
        out_specs=out_specs,
    )
    return pl.pallas_call(
        uniqa_kernel,
        out_shape=jax.ShapeDtypeStruct((1, B), jnp.float32),
        grid_spec=grid_spec,
        compiler_params=pltpu.CompilerParams(dimension_semantics=("arbitrary",)),
    )(*inputs)


def _crop_offsets(key, h, w, sample_num):
    th = tw = SAMPLE_SIZE
    ki, kj = jax.random.split(key)
    ii = jax.random.randint(ki, (sample_num,), 0, h - th + 1)
    jj = jax.random.randint(kj, (sample_num,), 0, w - tw + 1)
    return ii, jj


@functools.partial(jax.jit, static_argnames=("sample_num",))
def random_crop_test(x, prepared, key, sample_num=10):
    """Matches UniQA_Adapter_Patchtest_PromptEs.random_crop_test (deterministic RNG)."""
    b, c, h, w = x.shape
    th = tw = SAMPLE_SIZE
    ii, jj = _crop_offsets(key, h, w, sample_num)

    # Cast once to bf16 so the vectorized crop gather writes bf16 directly
    # (no extra full pass over the crop tensor). One vmapped dynamic_slice
    # replaces sample_num dynamic_slice HLOs + concatenate; row order matches
    # torch.cat over samples: n = s*b + batch.
    xb = x.astype(jnp.bfloat16)
    crops = jax.vmap(
        lambda i0, j0: lax.dynamic_slice(xb, (0, 0, i0, j0), (b, c, th, tw))
    )(ii, jj)                                              # (S, b, c, th, tw)
    x_flat = crops.reshape(sample_num * b, c * th * tw)    # (N, F), C/H/W row-major

    # Selection matrix folding the mean over the 4 groups and over sample_num
    # crops into the final in-kernel reduction.
    n = sample_num * b
    sel = ((jnp.arange(n)[:, None] % b) == jnp.arange(b)[None, :])
    sel = sel.astype(jnp.float32) * (1.0 / (N_GROUPS * sample_num))          # (N, b)

    out = score_crops_pallas(x_flat, prepared, sel)        # (1, b) lane-dense
    return out.reshape(b, 1)                               # module returns (b, 1)


def make_params(key, feat_in):
    ks = jax.random.split(key, 4)
    w_img = jax.random.normal(ks[0], (feat_in, EMBED_DIM), jnp.float32) * 0.02
    w_a1 = jax.random.normal(ks[1], (EMBED_DIM, ADAPT_HID), jnp.float32) * 0.05
    w_a2 = jax.random.normal(ks[2], (ADAPT_HID, EMBED_DIM), jnp.float32) * 0.05
    text = jax.random.normal(ks[3], (N_PROMPTS, EMBED_DIM), jnp.float32)
    return w_img, w_a1, w_a2, text


def prepare_frozen_params(raw_params, hw):
    """Host-side, one-time folding of the frozen weights."""
    w_img, w_a1, w_a2, text = raw_params
    mean_vec = jnp.repeat(jnp.array(OPENAI_CLIP_MEAN, jnp.float32), hw)        # (F,)
    invstd_vec = jnp.repeat(1.0 / jnp.array(OPENAI_CLIP_STD, jnp.float32), hw)  # (F,)

    # Fold CLIP normalization into the linear encoder: x@W' + bias.
    w_enc = (w_img * invstd_vec[:, None]).astype(jnp.bfloat16)                 # (F, D)
    b_enc = (-(mean_vec * invstd_vec)[None, :] @ w_img).astype(jnp.float32)    # (1, D)

    # Pre-normalize text features, fold logit_scale, pre-transpose -> (D, 20) bf16.
    txt = text / jnp.sqrt(jnp.sum(text * text, axis=-1, keepdims=True) + EPS)
    txt_t = (LOGIT_SCALE * txt).T.astype(jnp.bfloat16)                         # (D, 20)

    # Fused grouped-softmax helper: [group indicator | score-weighted indicator].
    g_den = (jnp.arange(N_PROMPTS)[:, None] // GROUP_SIZE
             == jnp.arange(N_GROUPS)[None, :]).astype(jnp.float32)             # (20, 4)
    score = jnp.tile(jnp.array([0.2, 0.4, 0.6, 0.8, 1.0], jnp.float32), N_GROUPS)
    g_num = g_den * score[:, None]                                             # (20, 4)
    g_comb = jnp.concatenate([g_den, g_num], axis=1).astype(jnp.bfloat16)      # (20, 8)

    return (w_enc, b_enc, w_a1.astype(jnp.bfloat16), w_a2.astype(jnp.bfloat16),
            txt_t, g_comb)


def reference_scores(x, raw_params, key, sample_num=10):
    """Pure-JAX f32 reference mirroring the PyTorch module's eval path."""
    w_img, w_a1, w_a2, text = raw_params
    b, c, h, w = x.shape
    th = tw = SAMPLE_SIZE
    ii, jj = _crop_offsets(key, h, w, sample_num)
    ii = np.asarray(ii); jj = np.asarray(jj)
    crops = [lax.dynamic_slice(x, (0, 0, int(i0), int(j0)), (b, c, th, tw))
             for i0, j0 in zip(ii, jj)]
    xc = jnp.concatenate(crops, axis=0)                                       # (N,c,h,w)
    mean = jnp.array(OPENAI_CLIP_MEAN, jnp.float32).reshape(1, 3, 1, 1)
    std = jnp.array(OPENAI_CLIP_STD, jnp.float32).reshape(1, 3, 1, 1)
    xc = (xc - mean) / std
    feat = xc.reshape(xc.shape[0], -1) @ w_img                                 # (N, D)
    hid = jnp.maximum(feat @ w_a1, 0.0)
    ada = jnp.maximum(hid @ w_a2, 0.0)
    img = feat + ada
    img = img / jnp.linalg.norm(img, axis=-1, keepdims=True)
    txt = text / jnp.linalg.norm(text, axis=-1, keepdims=True)
    logits = LOGIT_SCALE * (img @ txt.T)                                       # (N, 20)
    probs = jax.nn.softmax(logits.reshape(-1, N_GROUPS, GROUP_SIZE), axis=-1)
    lvl = jnp.array([0.2, 0.4, 0.6, 0.8, 1.0], jnp.float32)
    s = jnp.sum(probs * lvl, axis=-1).mean(axis=-1)                            # (N,)
    return s.reshape(sample_num, b).mean(axis=0).reshape(b, 1)


if __name__ == "__main__":
    key = jax.random.PRNGKey(0)
    kx, kp, kc = jax.random.split(key, 3)

    B, C, Hin, Win = 2, 3, 32, 32           # input larger than sample_size=16
    x = jax.random.uniform(kx, (B, C, Hin, Win), jnp.float32)

    F = C * SAMPLE_SIZE * SAMPLE_SIZE
    raw_params = make_params(kp, F)
    prepared = prepare_frozen_params(raw_params, SAMPLE_SIZE * SAMPLE_SIZE)

    out = random_crop_test(x, prepared, kc, sample_num=10)
    out = jax.block_until_ready(out)

    assert out.shape == (B, 1), out.shape
    assert bool(jnp.all(jnp.isfinite(out)))

    ref = reference_scores(x, raw_params, kc, sample_num=10)
    np.testing.assert_allclose(np.asarray(out), np.asarray(ref),
                               rtol=5e-2, atol=5e-2)

    print("KERNEL_OK")
</pallas_src>

<mosaic_0001>
module attributes {stable_mosaic.version = 11 : i64} {
  func.func @uniqa_kernel(%arg0: i32, %arg1: memref<20x768xbf16, #tpu.memory_space<vmem>>, %arg2: memref<768x64xbf16, #tpu.memory_space<vmem>>, %arg3: memref<1x64xf32, #tpu.memory_space<vmem>>, %arg4: memref<64x32xbf16, #tpu.memory_space<vmem>>, %arg5: memref<32x64xbf16, #tpu.memory_space<vmem>>, %arg6: memref<64x20xbf16, #tpu.memory_space<vmem>>, %arg7: memref<20x8xbf16, #tpu.memory_space<vmem>>, %arg8: memref<20x2xf32, #tpu.memory_space<vmem>>, %arg9: memref<1x2xf32, #tpu.memory_space<vmem>>) attributes {dimension_semantics = [#tpu.dimension_semantics<arbitrary>], iteration_bounds = array<i64: 1>, scalar_prefetch = 0 : i64, scratch_operands = 0 : i64, tpu.core_type = #tpu.core_type<tc>, window_params = [{pipeline_mode = #tpu.pipeline_mode<synchronous>, transform_indices = @transform_0, window_bounds = array<i64: 20, 768>}, {pipeline_mode = #tpu.pipeline_mode<synchronous>, transform_indices = @transform_1, window_bounds = array<i64: 768, 64>}, {pipeline_mode = #tpu.pipeline_mode<synchronous>, transform_indices = @transform_2, window_bounds = array<i64: 1, 64>}, {pipeline_mode = #tpu.pipeline_mode<synchronous>, transform_indices = @transform_3, window_bounds = array<i64: 64, 32>}, {pipeline_mode = #tpu.pipeline_mode<synchronous>, transform_indices = @transform_4, window_bounds = array<i64: 32, 64>}, {pipeline_mode = #tpu.pipeline_mode<synchronous>, transform_indices = @transform_5, window_bounds = array<i64: 64, 20>}, {pipeline_mode = #tpu.pipeline_mode<synchronous>, transform_indices = @transform_6, window_bounds = array<i64: 20, 8>}, {pipeline_mode = #tpu.pipeline_mode<synchronous>, transform_indices = @transform_7, window_bounds = array<i64: 20, 2>}, {pipeline_mode = #tpu.pipeline_mode<synchronous>, transform_indices = @transform_8, window_bounds = array<i64: 1, 2>}]} {
    %c0 = arith.constant 0 : index
    %c0_0 = arith.constant 0 : index
    %0 = vector.load %arg1[%c0, %c0_0] : memref<20x768xbf16, #tpu.memory_space<vmem>>, vector<20x768xbf16>
    %c0_1 = arith.constant 0 : index
    %c0_2 = arith.constant 0 : index
    %1 = vector.load %arg2[%c0_1, %c0_2] : memref<768x64xbf16, #tpu.memory_space<vmem>>, vector<768x64xbf16>
    %cst = arith.constant dense<0.000000e+00> : vector<20x64xf32>
    %2 = tpu.matmul %0, %1, %cst {dimension_numbers = #tpu.dot_dimension_numbers<[1], [0], [0], [1], [0, 0, 1, 1], [], []>} : vector<20x768xbf16>, vector<768x64xbf16>, vector<20x64xf32> -> vector<20x64xf32>
    %c0_3 = arith.constant 0 : index
    %c0_4 = arith.constant 0 : index
    %3 = vector.load %arg3[%c0_3, %c0_4] : memref<1x64xf32, #tpu.memory_space<vmem>>, vector<1x64xf32>
    %4 = vector.broadcast %3 : vector<1x64xf32> to vector<20x64xf32>
    %5 = arith.addf %2, %4 : vector<20x64xf32>
    %6 = arith.truncf %5 : vector<20x64xf32> to vector<20x64xbf16>
    %c0_5 = arith.constant 0 : index
    %c0_6 = arith.constant 0 : index
    %7 = vector.load %arg4[%c0_5, %c0_6] : memref<64x32xbf16, #tpu.memory_space<vmem>>, vector<64x32xbf16>
    %cst_7 = arith.constant dense<0.000000e+00> : vector<20x32xf32>
    %8 = tpu.matmul %6, %7, %cst_7 {dimension_numbers = #tpu.dot_dimension_numbers<[1], [0], [0], [1], [0, 0, 1, 1], [], []>} : vector<20x64xbf16>, vector<64x32xbf16>, vector<20x32xf32> -> vector<20x32xf32>
    %cst_8 = arith.constant 0.000000e+00 : f32
    %9 = vector.broadcast %cst_8 : f32 to vector<20x32xf32>
    %10 = arith.maximumf %8, %9 : vector<20x32xf32>
    %11 = arith.truncf %10 : vector<20x32xf32> to vector<20x32xbf16>
    %c0_9 = arith.constant 0 : index
    %c0_10 = arith.constant 0 : index
    %12 = vector.load %arg5[%c0_9, %c0_10] : memref<32x64xbf16, #tpu.memory_space<vmem>>, vector<32x64xbf16>
    %cst_11 = arith.constant dense<0.000000e+00> : vector<20x64xf32>
    %13 = tpu.matmul %11, %12, %cst_11 {dimension_numbers = #tpu.dot_dimension_numbers<[1], [0], [0], [1], [0, 0, 1, 1], [], []>} : vector<20x32xbf16>, vector<32x64xbf16>, vector<20x64xf32> -> vector<20x64xf32>
    %cst_12 = arith.constant 0.000000e+00 : f32
    %14 = vector.broadcast %cst_12 : f32 to vector<20x64xf32>
    %15 = arith.maximumf %13, %14 : vector<20x64xf32>
    %16 = arith.addf %5, %15 : vector<20x64xf32>
    %17 = arith.mulf %16, %16 : vector<20x64xf32>
    %cst_13 = arith.constant dense<0.000000e+00> : vector<20xf32>
    %18 = vector.multi_reduction <add>, %17, %cst_13 [1] : vector<20x64xf32> to vector<20xf32>
    %19 = vector.shape_cast %18 : vector<20xf32> to vector<20x1xf32>
    %cst_14 = arith.constant 9.99999996E-13 : f32
    %20 = vector.broadcast %cst_14 : f32 to vector<20x1xf32>
    %21 = arith.addf %19, %20 : vector<20x1xf32>
    %22 = math.rsqrt %21 : vector<20x1xf32>
    %23 = vector.broadcast %22 : vector<20x1xf32> to vector<20x64xf32>
    %24 = arith.mulf %16, %23 : vector<20x64xf32>
    %25 = arith.truncf %24 : vector<20x64xf32> to vector<20x64xbf16>
    %c0_15 = arith.constant 0 : index
    %c0_16 = arith.constant 0 : index
    %26 = vector.load %arg6[%c0_15, %c0_16] : memref<64x20xbf16, #tpu.memory_space<vmem>>, vector<64x20xbf16>
    %cst_17 = arith.constant dense<0.000000e+00> : vector<20x20xf32>
    %27 = tpu.matmul %25, %26, %cst_17 {dimension_numbers = #tpu.dot_dimension_numbers<[1], [0], [0], [1], [0, 0, 1, 1], [], []>} : vector<20x64xbf16>, vector<64x20xbf16>, vector<20x20xf32> -> vector<20x20xf32>
    %28 = math.exp %27 : vector<20x20xf32>
    %29 = arith.truncf %28 : vector<20x20xf32> to vector<20x20xbf16>
    %c0_18 = arith.constant 0 : index
    %c0_19 = arith.constant 0 : index
    %30 = vector.load %arg7[%c0_18, %c0_19] : memref<20x8xbf16, #tpu.memory_space<vmem>>, vector<20x8xbf16>
    %cst_20 = arith.constant dense<0.000000e+00> : vector<20x8xf32>
    %31 = tpu.matmul %29, %30, %cst_20 {dimension_numbers = #tpu.dot_dimension_numbers<[1], [0], [0], [1], [0, 0, 1, 1], [], []>} : vector<20x20xbf16>, vector<20x8xbf16>, vector<20x8xf32> -> vector<20x8xf32>
    %32 = vector.extract_strided_slice %31 {offsets = [0, 0], sizes = [20, 4], strides = [1, 1]} : vector<20x8xf32> to vector<20x4xf32>
    %33 = vector.extract_strided_slice %31 {offsets = [0, 4], sizes = [20, 4], strides = [1, 1]} : vector<20x8xf32> to vector<20x4xf32>
    %34 = tpu.reciprocal %32 {approx = true} : vector<20x4xf32> -> vector<20x4xf32>
    %35 = arith.mulf %32, %34 : vector<20x4xf32>
    %cst_21 = arith.constant 2.000000e+00 : f32
    %36 = vector.broadcast %cst_21 : f32 to vector<20x4xf32>
    %37 = arith.subf %36, %35 : vector<20x4xf32>
    %38 = arith.mulf %34, %37 : vector<20x4xf32>
    %39 = arith.mulf %33, %38 : vector<20x4xf32>
    %cst_22 = arith.constant dense<0.000000e+00> : vector<20xf32>
    %40 = vector.multi_reduction <add>, %39, %cst_22 [1] : vector<20x4xf32> to vector<20xf32>
    %41 = vector.shape_cast %40 : vector<20xf32> to vector<20x1xf32>
    %c0_23 = arith.constant 0 : index
    %c0_24 = arith.constant 0 : index
    %42 = vector.load %arg8[%c0_23, %c0_24] : memref<20x2xf32, #tpu.memory_space<vmem>>, vector<20x2xf32>
    %43 = vector.broadcast %41 : vector<20x1xf32> to vector<20x2xf32>
    %44 = arith.mulf %43, %42 : vector<20x2xf32>
    %cst_25 = arith.constant dense<0.000000e+00> : vector<2xf32>
    %45 = vector.multi_reduction <add>, %44, %cst_25 [0] : vector<20x2xf32> to vector<2xf32>
    %46 = vector.shape_cast %45 : vector<2xf32> to vector<1x2xf32>
    %c0_26 = arith.constant 0 : index
    %c0_27 = arith.constant 0 : index
    %47 = vector.load %arg9[%c0_26, %c0_27] : memref<1x2xf32, #tpu.memory_space<vmem>>, vector<1x2xf32>
    tpu.vector_store %arg9[%c0_26, %c0_27], %46 {strides = array<i32>} : memref<1x2xf32, #tpu.memory_space<vmem>>, vector<1x2xf32>,
    return
  }
  func.func @transform_0(%arg0: i32) -> (i32, i32) {
    %c0_i32 = arith.constant 0 : i32
    %c0_i32_0 = arith.constant 0 : i32
    %c0_i32_1 = arith.constant 0 : i32
    return %c0_i32, %c0_i32_0 : i32, i32
  }
  func.func @transform_1(%arg0: i32) -> (i32, i32) {
    %c0_i32 = arith.constant 0 : i32
    %c0_i32_0 = arith.constant 0 : i32
    %c0_i32_1 = arith.constant 0 : i32
    return %c0_i32, %c0_i32_0 : i32, i32
  }
  func.func @transform_2(%arg0: i32) -> (i32, i32) {
    %c0_i32 = arith.constant 0 : i32
    %c0_i32_0 = arith.constant 0 : i32
    %c0_i32_1 = arith.constant 0 : i32
    return %c0_i32, %c0_i32_0 : i32, i32
  }
  func.func @transform_3(%arg0: i32) -> (i32, i32) {
    %c0_i32 = arith.constant 0 : i32
    %c0_i32_0 = arith.constant 0 : i32
    %c0_i32_1 = arith.constant 0 : i32
    return %c0_i32, %c0_i32_0 : i32, i32
  }
  func.func @transform_4(%arg0: i32) -> (i32, i32) {
    %c0_i32 = arith.constant 0 : i32
    %c0_i32_0 = arith.constant 0 : i32
    %c0_i32_1 = arith.constant 0 : i32
    return %c0_i32, %c0_i32_0 : i32, i32
  }
  func.func @transform_5(%arg0: i32) -> (i32, i32) {
    %c0_i32 = arith.constant 0 : i32
    %c0_i32_0 = arith.constant 0 : i32
    %c0_i32_1 = arith.constant 0 : i32
    return %c0_i32, %c0_i32_0 : i32, i32
  }
  func.func @transform_6(%arg0: i32) -> (i32, i32) {
    %c0_i32 = arith.constant 0 : i32
    %c0_i32_0 = arith.constant 0 : i32
    %c0_i32_1 = arith.constant 0 : i32
    return %c0_i32, %c0_i32_0 : i32, i32
  }
  func.func @transform_7(%arg0: i32) -> (i32, i32) {
    %c0_i32 = arith.constant 0 : i32
    %c0_i32_0 = arith.constant 0 : i32
    %c0_i32_1 = arith.constant 0 : i32
    return %c0_i32, %c0_i32_0 : i32, i32
  }
  func.func @transform_8(%arg0: i32) -> (i32, i32) {
    %c0_i32 = arith.constant 0 : i32
    %c0_i32_0 = arith.constant 0 : i32
    %c0_i32_1 = arith.constant 0 : i32
    return %c0_i32, %c0_i32_0 : i32, i32
  }
}

</mosaic_0001>

<llo_original>
// kernel: random_crop_test.1
$region0: #{random_crop_test.1}
  #allocation0 [shape = 'u32[]', space=smem, size = 0x4, offset = 0x4, fixed_abs, tag = 'smem constant byte address 0x4 - core index']
  #allocation1 [shape = 'u32[144,128]{1,0:T(1,128)}', space=vmem, size = 0x12000, scoped, tag = 'internal scratch']
  %s0 = inlined_call_operand.vmem [shape: bf16[20,768], index: 0, kind: input, shape index: {}]
  %s1 = inlined_call_operand.vmem [shape: bf16[768,64], index: 1, kind: input, shape index: {}]
  %s2 = inlined_call_operand.vmem [shape: f32[1,64], index: 2, kind: input, shape index: {}]
  %s3 = inlined_call_operand.vmem [shape: bf16[64,32], index: 3, kind: input, shape index: {}]
  %s4 = inlined_call_operand.vmem [shape: bf16[32,64], index: 4, kind: input, shape index: {}]
  %s5 = inlined_call_operand.vmem [shape: bf16[64,20], index: 5, kind: input, shape index: {}]
  %s6 = inlined_call_operand.vmem [shape: bf16[20,8], index: 6, kind: input, shape index: {}]
  %s7 = inlined_call_operand.vmem [shape: f32[20,2], index: 7, kind: input, shape index: {}]
  %s8 = inlined_call_operand.hbm [shape: f32[1,2], index: 8, kind: output, shape index: {}]
  %s9 = sld [smem:[#allocation0]]
  $region42: #{random_crop_test.1} parent=0
    _
  %s11 = ssub.s32 1, %s9
  %s12 = scalar_select 0, %s11, %s9
  $region1: #{random_crop_test.1} parent=0
    #allocation2 [shape = 'u8[512]{0}', space=vmem, size = 0x400, scoped, tag = 'output window, operand 0, single buffered']
    #allocation3 [shape = 's32[1]{0}', space=sflag, size = 0x4, scoped, tag = 'scoped memory for random_crop_test.1']
    %13 = vsyncpa [#allocation3], 0
    // Predicated region
    $region2: #{random_crop_test.1} parent=1 // pred_check
      _
    $region3: #{random_crop_test.1} parent=1 // pred_check_branch
      %15 = sbr.rel (0) target = $region5
    $region4: #{random_crop_test.1} parent=1 // pred_region
      _
    $region5: #{random_crop_test.1} parent=1 // pred_fallthru
      _
    // Predicated region
    $region6: #{random_crop_test.1} parent=1 // pred_check
      _
    $region7: #{random_crop_test.1} parent=1 // pred_check_branch
      %17 = sbr.rel (0) target = $region9
    $region8: #{random_crop_test.1} parent=1 // pred_region
      _
    $region9: #{random_crop_test.1} parent=1 // pred_fallthru
      _
    // Predicated region
    $region10: #{random_crop_test.1} parent=1 // pred_check
      _
    $region11: #{random_crop_test.1} parent=1 // pred_check_branch
      %19 = sbr.rel (0) target = $region13
    $region12: #{random_crop_test.1} parent=1 // pred_region
      _
    $region13: #{random_crop_test.1} parent=1 // pred_fallthru
      _
    // Predicated region
    $region14: #{random_crop_test.1} parent=1 // pred_check
      _
    $region15: #{random_crop_test.1} parent=1 // pred_check_branch
      %21 = sbr.rel (0) target = $region17
    $region16: #{random_crop_test.1} parent=1 // pred_region
      _
    $region17: #{random_crop_test.1} parent=1 // pred_fallthru
      _
    // Predicated region
    $region18: #{random_crop_test.1} parent=1 // pred_check
      _
    $region19: #{random_crop_test.1} parent=1 // pred_check_branch
      %23 = sbr.rel (0) target = $region21
    $region20: #{random_crop_test.1} parent=1 // pred_region
      _
    $region21: #{random_crop_test.1} parent=1 // pred_fallthru
      _
    // Predicated region
    $region22: #{random_crop_test.1} parent=1 // pred_check
      _
    $region23: #{random_crop_test.1} parent=1 // pred_check_branch
      %25 = sbr.rel (0) target = $region25
    $region24: #{random_crop_test.1} parent=1 // pred_region
      _
    $region25: #{random_crop_test.1} parent=1 // pred_fallthru
      _
    // Predicated region
    $region26: #{random_crop_test.1} parent=1 // pred_check
      _
    $region27: #{random_crop_test.1} parent=1 // pred_check_branch
      %27 = sbr.rel (0) target = $region29
    $region28: #{random_crop_test.1} parent=1 // pred_region
      _
    $region29: #{random_crop_test.1} parent=1 // pred_fallthru
      _
    // Predicated region
    $region30: #{random_crop_test.1} parent=1 // pred_check
      _
    $region31: #{random_crop_test.1} parent=1 // pred_check_branch
      %29 = sbr.rel (0) target = $region33
    $region32: #{random_crop_test.1} parent=1 // pred_region
      _
    $region33: #{random_crop_test.1} parent=1 // pred_fallthru
      _
    %v31 = vld [vmem:[%s0] sm:$0xff]
    %v32 = vld [vmem:[%s0 + $0x8] sm:$0xff]
    %v33 = vld [vmem:[%s0 + $0x10] sm:$0xff]
    %v34 = vld [vmem:[%s0 + $0x18] sm:$0xff]
    %v35 = vld [vmem:[%s0 + $0x20] sm:$0xff]
    %v36 = vld [vmem:[%s0 + $0x28] sm:$0xff]
    %v37 = vld [vmem:[%s0 + $0x30] sm:$0x33]
    %v38 = vld [vmem:[%s0 + $0x38] sm:$0x33]
    %v39 = vld [vmem:[%s0 + $0x40] sm:$0x33]
    %v40 = vld [vmem:[%s1] sm:$0xf]
    %v41 = vld [vmem:[%s1 + $0x4] sm:$0xf]
    %v42 = vld [vmem:[%s1 + $0x8] sm:$0xf]
    %v43 = vld [vmem:[%s1 + $0xc] sm:$0xf]
    %v44 = vld [vmem:[%s1 + $0x10] sm:$0xf]
    %v45 = vld [vmem:[%s1 + $0x14] sm:$0xf]
    %v46 = vld [vmem:[%s1 + $0x18] sm:$0xf]
    %v47 = vld [vmem:[%s1 + $0x1c] sm:$0xf]
    %v48 = vld [vmem:[%s1 + $0x20] sm:$0xf]
    %v49 = vld [vmem:[%s1 + $0x24] sm:$0xf]
    %v50 = vld [vmem:[%s1 + $0x28] sm:$0xf]
    %v51 = vld [vmem:[%s1 + $0x2c] sm:$0xf]
    %v52 = vld [vmem:[%s1 + $0x30] sm:$0xf]
    %v53 = vld [vmem:[%s1 + $0x34] sm:$0xf]
    %v54 = vld [vmem:[%s1 + $0x38] sm:$0xf]
    %v55 = vld [vmem:[%s1 + $0x3c] sm:$0xf]
    %v56 = vld [vmem:[%s1 + $0x40] sm:$0xf]
    %v57 = vld [vmem:[%s1 + $0x44] sm:$0xf]
    %v58 = vld [vmem:[%s1 + $0x48] sm:$0xf]
    %v59 = vld [vmem:[%s1 + $0x4c] sm:$0xf]
    %v60 = vld [vmem:[%s1 + $0x50] sm:$0xf]
    %v61 = vld [vmem:[%s1 + $0x54] sm:$0xf]
    %v62 = vld [vmem:[%s1 + $0x58] sm:$0xf]
    %v63 = vld [vmem:[%s1 + $0x5c] sm:$0xf]
    %v64 = vld [vmem:[%s1 + $0x60] sm:$0xf]
    %v65 = vld [vmem:[%s1 + $0x64] sm:$0xf]
    %v66 = vld [vmem:[%s1 + $0x68] sm:$0xf]
    %v67 = vld [vmem:[%s1 + $0x6c] sm:$0xf]
    %v68 = vld [vmem:[%s1 + $0x70] sm:$0xf]
    %v69 = vld [vmem:[%s1 + $0x74] sm:$0xf]
    %v70 = vld [vmem:[%s1 + $0x78] sm:$0xf]
    %v71 = vld [vmem:[%s1 + $0x7c] sm:$0xf]
    %v72 = vld [vmem:[%s1 + $0x80] sm:$0xf]
    %v73 = vld [vmem:[%s1 + $0x84] sm:$0xf]
    %v74 = vld [vmem:[%s1 + $0x88] sm:$0xf]
    %v75 = vld [vmem:[%s1 + $0x8c] sm:$0xf]
    %v76 = vld [vmem:[%s1 + $0x90] sm:$0xf]
    %v77 = vld [vmem:[%s1 + $0x94] sm:$0xf]
    %v78 = vld [vmem:[%s1 + $0x98] sm:$0xf]
    %v79 = vld [vmem:[%s1 + $0x9c] sm:$0xf]
    %v80 = vld [vmem:[%s1 + $0xa0] sm:$0xf]
    %v81 = vld [vmem:[%s1 + $0xa4] sm:$0xf]
    %v82 = vld [vmem:[%s1 + $0xa8] sm:$0xf]
    %v83 = vld [vmem:[%s1 + $0xac] sm:$0xf]
    %v84 = vld [vmem:[%s1 + $0xb0] sm:$0xf]
    %v85 = vld [vmem:[%s1 + $0xb4] sm:$0xf]
    %v86 = vld [vmem:[%s1 + $0xb8] sm:$0xf]
    %v87 = vld [vmem:[%s1 + $0xbc] sm:$0xf]
    %v88 = vld [vmem:[%s1 + $0xc0] sm:$0xf]
    %v89 = vld [vmem:[%s1 + $0xc4] sm:$0xf]
    %v90 = vld [vmem:[%s1 + $0xc8] sm:$0xf]
    %v91 = vld [vmem:[%s1 + $0xcc] sm:$0xf]
    %v92 = vld [vmem:[%s1 + $0xd0] sm:$0xf]
    %v93 = vld [vmem:[%s1 + $0xd4] sm:$0xf]
    %v94 = vld [vmem:[%s1 + $0xd8] sm:$0xf]
    %v95 = vld [vmem:[%s1 + $0xdc] sm:$0xf]
    %v96 = vld [vmem:[%s1 + $0xe0] sm:$0xf]
    %v97 = vld [vmem:[%s1 + $0xe4] sm:$0xf]
    %v98 = vld [vmem:[%s1 + $0xe8] sm:$0xf]
    %v99 = vld [vmem:[%s1 + $0xec] sm:$0xf]
    %v100 = vld [vmem:[%s1 + $0xf0] sm:$0xf]
    %v101 = vld [vmem:[%s1 + $0xf4] sm:$0xf]
    %v102 = vld [vmem:[%s1 + $0xf8] sm:$0xf]
    %v103 = vld [vmem:[%s1 + $0xfc] sm:$0xf]
    %v104 = vld [vmem:[%s1 + $0x100] sm:$0xf]
    %v105 = vld [vmem:[%s1 + $0x104] sm:$0xf]
    %v106 = vld [vmem:[%s1 + $0x108] sm:$0xf]
    %v107 = vld [vmem:[%s1 + $0x10c] sm:$0xf]
    %v108 = vld [vmem:[%s1 + $0x110] sm:$0xf]
    %v109 = vld [vmem:[%s1 + $0x114] sm:$0xf]
    %v110 = vld [vmem:[%s1 + $0x118] sm:$0xf]
    %v111 = vld [vmem:[%s1 + $0x11c] sm:$0xf]
    %v112 = vld [vmem:[%s1 + $0x120] sm:$0xf]
    %v113 = vld [vmem:[%s1 + $0x124] sm:$0xf]
    %v114 = vld [vmem:[%s1 + $0x128] sm:$0xf]
    %v115 = vld [vmem:[%s1 + $0x12c] sm:$0xf]
    %v116 = vld [vmem:[%s1 + $0x130] sm:$0xf]
    %v117 = vld [vmem:[%s1 + $0x134] sm:$0xf]
    %v118 = vld [vmem:[%s1 + $0x138] sm:$0xf]
    %v119 = vld [vmem:[%s1 + $0x13c] sm:$0xf]
    %v120 = vld [vmem:[%s1 + $0x140] sm:$0xf]
    %v121 = vld [vmem:[%s1 + $0x144] sm:$0xf]
    %v122 = vld [vmem:[%s1 + $0x148] sm:$0xf]
    %v123 = vld [vmem:[%s1 + $0x14c] sm:$0xf]
    %v124 = vld [vmem:[%s1 + $0x150] sm:$0xf]
    %v125 = vld [vmem:[%s1 + $0x154] sm:$0xf]
    %v126 = vld [vmem:[%s1 + $0x158] sm:$0xf]
    %v127 = vld [vmem:[%s1 + $0x15c] sm:$0xf]
    %v128 = vld [vmem:[%s1 + $0x160] sm:$0xf]
    %v129 = vld [vmem:[%s1 + $0x164] sm:$0xf]
    %v130 = vld [vmem:[%s1 + $0x168] sm:$0xf]
    %v131 = vld [vmem:[%s1 + $0x16c] sm:$0xf]
    %v132 = vld [vmem:[%s1 + $0x170] sm:$0xf]
    %v133 = vld [vmem:[%s1 + $0x174] sm:$0xf]
    %v134 = vld [vmem:[%s1 + $0x178] sm:$0xf]
    %v135 = vld [vmem:[%s1 + $0x17c] sm:$0xf]
    %v136 = vld [vmem:[%s2] sm:$0x1]
    %v138 = vlaneseq
    %v139 = vshrl.u32 %v138, 7
    %v140 = vsub.s32 0, %v139
    %v141 = vrot.slane %v136, %v140
    %v152 = vunpack.c.l.b16 %v31
    %v153 = vunpack.c.h.b16 %v31
    %v154 = vunpack.c.l.b16 %v32
    %v155 = vunpack.c.h.b16 %v32
    %v156 = vunpack.c.l.b16 %v33
    %v157 = vunpack.c.h.b16 %v33
    %v158 = vunpack.c.l.b16 %v34
    %v159 = vunpack.c.h.b16 %v34
    %v160 = vunpack.c.l.b16 %v35
    %v161 = vunpack.c.h.b16 %v35
    %v162 = vunpack.c.l.b16 %v36
    %v163 = vunpack.c.h.b16 %v36
    %v164 = vunpack.c.l.b16 %v37
    %v165 = vunpack.c.h.b16 %v37
    %v166 = vunpack.c.l.b16 %v38
    %v167 = vunpack.c.h.b16 %v38
    %v168 = vunpack.c.l.b16 %v39
    %v169 = vunpack.c.h.b16 %v39
    %v170 = vpack.c.b16 %v158, %v152
    %v171 = vpack.c.b16 %v159, %v153
    %v172 = vpack.c.b16 %v160, %v154
    %v173 = vpack.c.b16 %v161, %v155
    %v174 = vpack.c.b16 %v162, %v156
    %v175 = vpack.c.b16 %v163, %v157
    %v176 = vpack.c.b16 %v164, %v164
    %v177 = vpack.c.b16 %v165, %v165
    %v178 = vpack.c.b16 %v166, %v166
    %v179 = vpack.c.b16 %v167, %v167
    %v180 = vpack.c.b16 %v168, %v168
    %v181 = vpack.c.b16 %v169, %v169
    %v290 = vunpack.c.l.b16 %v40
    %v291 = vunpack.c.l.b16 %v41
    %v292 = vunpack.c.l.b16 %v42
    %v293 = vunpack.c.l.b16 %v43
    %v294 = vunpack.c.l.b16 %v44
    %v295 = vunpack.c.l.b16 %v45
    %v296 = vunpack.c.l.b16 %v46
    %v297 = vunpack.c.l.b16 %v47
    %v298 = vunpack.c.l.b16 %v48
    %v299 = vunpack.c.l.b16 %v49
    %v300 = vunpack.c.l.b16 %v50
    %v301 = vunpack.c.l.b16 %v51
    %v302 = vunpack.c.l.b16 %v52
    %v303 = vunpack.c.l.b16 %v53
    %v304 = vunpack.c.l.b16 %v54
    %v305 = vunpack.c.l.b16 %v55
    %v306 = vunpack.c.l.b16 %v56
    %v307 = vunpack.c.l.b16 %v57
    %v308 = vunpack.c.l.b16 %v58
    %v309 = vunpack.c.l.b16 %v59
    %v310 = vunpack.c.l.b16 %v60
    %v311 = vunpack.c.l.b16 %v61
    %v312 = vunpack.c.l.b16 %v62
    %v313 = vunpack.c.l.b16 %v63
    %v314 = vunpack.c.l.b16 %v64
    %v315 = vunpack.c.l.b16 %v65
    %v316 = vunpack.c.l.b16 %v66
    %v317 = vunpack.c.l.b16 %v67
    %v318 = vunpack.c.l.b16 %v68
    %v319 = vunpack.c.l.b16 %v69
    %v320 = vunpack.c.l.b16 %v70
    %v321 = vunpack.c.l.b16 %v71
    %v322 = vunpack.c.l.b16 %v72
    %v323 = vunpack.c.l.b16 %v73
    %v324 = vunpack.c.l.b16 %v74
    %v325 = vunpack.c.l.b16 %v75
    %v326 = vunpack.c.l.b16 %v76
    %v327 = vunpack.c.l.b16 %v77
    %v328 = vunpack.c.l.b16 %v78
    %v329 = vunpack.c.l.b16 %v79
    %v330 = vunpack.c.l.b16 %v80
    %v331 = vunpack.c.l.b16 %v81
    %v332 = vunpack.c.l.b16 %v82
    %v333 = vunpack.c.l.b16 %v83
    %v334 = vunpack.c.l.b16 %v84
    %v335 = vunpack.c.l.b16 %v85
    %v336 = vunpack.c.l.b16 %v86
    %v337 = vunpack.c.l.b16 %v87
    %v338 = vunpack.c.l.b16 %v88
    %v339 = vunpack.c.l.b16 %v89
    %v340 = vunpack.c.l.b16 %v90
    %v341 = vunpack.c.l.b16 %v91
    %v342 = vunpack.c.l.b16 %v92
    %v343 = vunpack.c.l.b16 %v93
    %v344 = vunpack.c.l.b16 %v94
    %v345 = vunpack.c.l.b16 %v95
    %v346 = vunpack.c.l.b16 %v96
    %v347 = vunpack.c.l.b16 %v97
    %v348 = vunpack.c.l.b16 %v98
    %v349 = vunpack.c.l.b16 %v99
    %v350 = vunpack.c.l.b16 %v100
    %v351 = vunpack.c.l.b16 %v101
    %v352 = vunpack.c.l.b16 %v102
    %v353 = vunpack.c.l.b16 %v103
    %v354 = vunpack.c.l.b16 %v104
    %v355 = vunpack.c.l.b16 %v105
    %v356 = vunpack.c.l.b16 %v106
    %v357 = vunpack.c.l.b16 %v107
    %v358 = vunpack.c.l.b16 %v108
    %v359 = vunpack.c.l.b16 %v109
    %v360 = vunpack.c.l.b16 %v110
    %v361 = vunpack.c.l.b16 %v111
    %v362 = vunpack.c.l.b16 %v112
    %v363 = vunpack.c.l.b16 %v113
    %v364 = vunpack.c.l.b16 %v114
    %v365 = vunpack.c.l.b16 %v115
    %v366 = vunpack.c.l.b16 %v116
    %v367 = vunpack.c.l.b16 %v117
    %v368 = vunpack.c.l.b16 %v118
    %v369 = vunpack.c.l.b16 %v119
    %v370 = vunpack.c.l.b16 %v120
    %v371 = vunpack.c.l.b16 %v121
    %v372 = vunpack.c.l.b16 %v122
    %v373 = vunpack.c.l.b16 %v123
    %v374 = vunpack.c.l.b16 %v124
    %v375 = vunpack.c.l.b16 %v125
    %v376 = vunpack.c.l.b16 %v126
    %v377 = vunpack.c.l.b16 %v127
    %v378 = vunpack.c.l.b16 %v128
    %v379 = vunpack.c.l.b16 %v129
    %v380 = vunpack.c.l.b16 %v130
    %v381 = vunpack.c.l.b16 %v131
    %v382 = vunpack.c.l.b16 %v132
    %v383 = vunpack.c.l.b16 %v133
    %v384 = vunpack.c.l.b16 %v134
    %v385 = vunpack.c.l.b16 %v135
    %v386 = vpack.c.b16 %v291, %v290
    %v387 = vpack.c.b16 %v293, %v292
    %v388 = vpack.c.b16 %v295, %v294
    %v389 = vpack.c.b16 %v297, %v296
    %v390 = vpack.c.b16 %v299, %v298
    %v391 = vpack.c.b16 %v301, %v300
    %v392 = vpack.c.b16 %v303, %v302
    %v393 = vpack.c.b16 %v305, %v304
    %v394 = vpack.c.b16 %v307, %v306
    %v395 = vpack.c.b16 %v309, %v308
    %v396 = vpack.c.b16 %v311, %v310
    %v397 = vpack.c.b16 %v313, %v312
    %v398 = vpack.c.b16 %v315, %v314
    %v399 = vpack.c.b16 %v317, %v316
    %v400 = vpack.c.b16 %v319, %v318
    %v401 = vpack.c.b16 %v321, %v320
    %v402 = vpack.c.b16 %v323, %v322
    %v403 = vpack.c.b16 %v325, %v324
    %v404 = vpack.c.b16 %v327, %v326
    %v405 = vpack.c.b16 %v329, %v328
    %v406 = vpack.c.b16 %v331, %v330
    %v407 = vpack.c.b16 %v333, %v332
    %v408 = vpack.c.b16 %v335, %v334
    %v409 = vpack.c.b16 %v337, %v336
    %v410 = vpack.c.b16 %v339, %v338
    %v411 = vpack.c.b16 %v341, %v340
    %v412 = vpack.c.b16 %v343, %v342
    %v413 = vpack.c.b16 %v345, %v344
    %v414 = vpack.c.b16 %v347, %v346
    %v415 = vpack.c.b16 %v349, %v348
    %v416 = vpack.c.b16 %v351, %v350
    %v417 = vpack.c.b16 %v353, %v352
    %v418 = vpack.c.b16 %v355, %v354
    %v419 = vpack.c.b16 %v357, %v356
    %v420 = vpack.c.b16 %v359, %v358
    %v421 = vpack.c.b16 %v361, %v360
    %v422 = vpack.c.b16 %v363, %v362
    %v423 = vpack.c.b16 %v365, %v364
    %v424 = vpack.c.b16 %v367, %v366
    %v425 = vpack.c.b16 %v369, %v368
    %v426 = vpack.c.b16 %v371, %v370
    %v427 = vpack.c.b16 %v373, %v372
    %v428 = vpack.c.b16 %v375, %v374
    %v429 = vpack.c.b16 %v377, %v376
    %v430 = vpack.c.b16 %v379, %v378
    %v431 = vpack.c.b16 %v381, %v380
    %v432 = vpack.c.b16 %v383, %v382
    %v433 = vpack.c.b16 %v385, %v384
    %482 = vmatprep.subr.bf16.mxu0 0
    %483 = vmatpush1.bf16.msra.mxu0 %v386
    %484 = vmatprep.subr.bf16.mxu0 0
    %485 = vmatpush1.bf16.msra.mxu0 %v387
    %486 = vmatprep.subr.bf16.mxu0 0
    %487 = vmatpush1.bf16.msra.mxu0 %v388
    %488 = vmatprep.subr.bf16.mxu0 0
    %489 = vmatpush1.bf16.msra.mxu0 %v389
    %490 = vmatprep.subr.bf16.mxu0 0
    %491 = vmatpush1.bf16.msra.mxu0 %v390
    %492 = vmatprep.subr.bf16.mxu0 0
    %493 = vmatpush1.bf16.msra.mxu0 %v391
    %494 = vmatprep.subr.bf16.mxu0 0
    %495 = vmatpush1.bf16.msra.mxu0 %v392
    %496 = vmatprep.subr.bf16.mxu0 0
    %497 = vmatpush1.bf16.msra.mxu0 %v393
    %498 = vmatprep.subr.bf16.mxu0 0
    %499 = vmatpush1.bf16.msra.mxu0 %v394
    %500 = vmatprep.subr.bf16.mxu0 0
    %501 = vmatpush1.bf16.msra.mxu0 %v395
    %502 = vmatprep.subr.bf16.mxu0 0
    %503 = vmatpush1.bf16.msra.mxu0 %v396
    %504 = vmatprep.subr.bf16.mxu0 0
    %505 = vmatpush1.bf16.msra.mxu0 %v397
    %506 = vmatprep.subr.bf16.mxu0 0
    %507 = vmatpush1.bf16.msra.mxu0 %v398
    %508 = vmatprep.subr.bf16.mxu0 0
    %509 = vmatpush1.bf16.msra.mxu0 %v399
    %510 = vmatprep.subr.bf16.mxu0 0
    %511 = vmatpush1.bf16.msra.mxu0 %v400
    %512 = vmatprep.subr.bf16.mxu0 0
    %513 = vmatpush1.bf16.msra.mxu0 %v401
    %514 = vmatprep.mubr.bf16.mxu0 %v171
    %515 = vmatmul.mubr.bf16.gmra.mrb[0].mxu0 %v170
    %v516 = vpop.f32.mrb[0].mxu0
    %v517 = vadd.f32 %v141, %v516
    %v518 = vpop.f32.mrb[0].mxu0
    %v519 = vpop.f32.mrb[0].mxu0
    %v520 = vadd.f32 %v141, %v519
    %v521 = vpop.f32.mrb[0].mxu0
    %522 = vmatprep.mubr.bf16.mxu0 %v177
    %523 = vmatmul.mubr.bf16.gmra.mrb[0].mxu0 %v176
    %v524 = vpop.f32.mrb[0].mxu0
    %v525 = vadd.f32 %v141, %v524
    %v526 = vpop.f32.mrb[0].mxu0
    %v527 = vpop.f32.mrb[0].mxu0
    %v528 = vpop.f32.mrb[0].mxu0
    %529 = vdwg.mxu0
    %530 = vmatprep.subr.bf16.mxu0 0
    %531 = vmatpush1.bf16.msra.mxu0 %v402
    %532 = vmatprep.subr.bf16.mxu0 0
    %533 = vmatpush1.bf16.msra.mxu0 %v403
    %534 = vmatprep.subr.bf16.mxu0 0
    %535 = vmatpush1.bf16.msra.mxu0 %v404
    %536 = vmatprep.subr.bf16.mxu0 0
    %537 = vmatpush1.bf16.msra.mxu0 %v405
    %538 = vmatprep.subr.bf16.mxu0 0
    %539 = vmatpush1.bf16.msra.mxu0 %v406
    %540 = vmatprep.subr.bf16.mxu0 0
    %541 = vmatpush1.bf16.msra.mxu0 %v407
    %542 = vmatprep.subr.bf16.mxu0 0
    %543 = vmatpush1.bf16.msra.mxu0 %v408
    %544 = vmatprep.subr.bf16.mxu0 0
    %545 = vmatpush1.bf16.msra.mxu0 %v409
    %546 = vmatprep.subr.bf16.mxu0 0
    %547 = vmatpush1.bf16.msra.mxu0 %v410
    %548 = vmatprep.subr.bf16.mxu0 0
    %549 = vmatpush1.bf16.msra.mxu0 %v411
    %550 = vmatprep.subr.bf16.mxu0 0
    %551 = vmatpush1.bf16.msra.mxu0 %v412
    %552 = vmatprep.subr.bf16.mxu0 0
    %553 = vmatpush1.bf16.msra.mxu0 %v413
    %554 = vmatprep.subr.bf16.mxu0 0
    %555 = vmatpush1.bf16.msra.mxu0 %v414
    %556 = vmatprep.subr.bf16.mxu0 0
    %557 = vmatpush1.bf16.msra.mxu0 %v415
    %558 = vmatprep.subr.bf16.mxu0 0
    %559 = vmatpush1.bf16.msra.mxu0 %v416
    %560 = vmatprep.subr.bf16.mxu0 0
    %561 = vmatpush1.bf16.msra.mxu0 %v417
    %562 = vmatprep.mubr.bf16.mxu0 %v173
    %563 = vmatmul.mubr.bf16.gmra.mrb[0].mxu0 %v172
    %v564 = vpop.f32.mrb[0].mxu0
    %v565 = vadd.f32 %v517, %v564
    %v566 = vpop.f32.mrb[0].mxu0
    %v567 = vpop.f32.mrb[0].mxu0
    %v568 = vadd.f32 %v520, %v567
    %v569 = vpop.f32.mrb[0].mxu0
    %570 = vmatprep.mubr.bf16.mxu0 %v179
    %571 = vmatmul.mubr.bf16.gmra.mrb[0].mxu0 %v178
    %v572 = vpop.f32.mrb[0].mxu0
    %v573 = vadd.f32 %v525, %v572
    %v574 = vpop.f32.mrb[0].mxu0
    %v575 = vpop.f32.mrb[0].mxu0
    %v576 = vpop.f32.mrb[0].mxu0
    %577 = vdwg.mxu0
    %578 = vmatprep.subr.bf16.mxu0 0
    %579 = vmatpush1.bf16.msra.mxu0 %v418
    %580 = vmatprep.subr.bf16.mxu0 0
    %581 = vmatpush1.bf16.msra.mxu0 %v419
    %582 = vmatprep.subr.bf16.mxu0 0
    %583 = vmatpush1.bf16.msra.mxu0 %v420
    %584 = vmatprep.subr.bf16.mxu0 0
    %585 = vmatpush1.bf16.msra.mxu0 %v421
    %586 = vmatprep.subr.bf16.mxu0 0
    %587 = vmatpush1.bf16.msra.mxu0 %v422
    %588 = vmatprep.subr.bf16.mxu0 0
    %589 = vmatpush1.bf16.msra.mxu0 %v423
    %590 = vmatprep.subr.bf16.mxu0 0
    %591 = vmatpush1.bf16.msra.mxu0 %v424
    %592 = vmatprep.subr.bf16.mxu0 0
    %593 = vmatpush1.bf16.msra.mxu0 %v425
    %594 = vmatprep.subr.bf16.mxu0 0
    %595 = vmatpush1.bf16.msra.mxu0 %v426
    %596 = vmatprep.subr.bf16.mxu0 0
    %597 = vmatpush1.bf16.msra.mxu0 %v427
    %598 = vmatprep.subr.bf16.mxu0 0
    %599 = vmatpush1.bf16.msra.mxu0 %v428
    %600 = vmatprep.subr.bf16.mxu0 0
    %601 = vmatpush1.bf16.msra.mxu0 %v429
    %602 = vmatprep.subr.bf16.mxu0 0
    %603 = vmatpush1.bf16.msra.mxu0 %v430
    %604 = vmatprep.subr.bf16.mxu0 0
    %605 = vmatpush1.bf16.msra.mxu0 %v431
    %606 = vmatprep.subr.bf16.mxu0 0
    %607 = vmatpush1.bf16.msra.mxu0 %v432
    %608 = vmatprep.subr.bf16.mxu0 0
    %609 = vmatpush1.bf16.msra.mxu0 %v433
    %610 = vmatprep.mubr.bf16.mxu0 %v175
    %611 = vmatmul.mubr.bf16.gmra.mrb[0].mxu0 %v174
    %v612 = vpop.f32.mrb[0].mxu0
    %v613 = vadd.f32 %v565, %v612
    %v614 = vpop.f32.mrb[0].mxu0
    %v615 = vpop.f32.mrb[0].mxu0
    %v616 = vadd.f32 %v568, %v615
    %v617 = vpop.f32.mrb[0].mxu0
    %618 = vmatprep.mubr.bf16.mxu0 %v181
    %619 = vmatmul.mubr.bf16.gmra.mrb[0].mxu0 %v180
    %v620 = vpop.f32.mrb[0].mxu0
    %v621 = vadd.f32 %v573, %v620
    %v622 = vpop.f32.mrb[0].mxu0
    %v623 = vpop.f32.mrb[0].mxu0
    %v624 = vpop.f32.mrb[0].mxu0
    %625 = vdwg.mxu0
    %v626 = vpack.c.bf16 %v616, %v613
    %v627 = vpack.c.bf16 %v621, %v621
    %v628 = vld [vmem:[%s3] sm:$0xf]
    %v629 = vld [vmem:[%s3 + $0x4] sm:$0xf]
    %v630 = vld [vmem:[%s3 + $0x8] sm:$0xf]
    %v631 = vld [vmem:[%s3 + $0xc] sm:$0xf]
    %v632 = vld [vmem:[%s3 + $0x10] sm:$0xf]
    %v633 = vld [vmem:[%s3 + $0x14] sm:$0xf]
    %v634 = vld [vmem:[%s3 + $0x18] sm:$0xf]
    %v635 = vld [vmem:[%s3 + $0x1c] sm:$0xf]
    %v644 = vunpack.c.l.b16 %v628
    %v645 = vunpack.c.l.b16 %v629
    %v646 = vunpack.c.l.b16 %v630
    %v647 = vunpack.c.l.b16 %v631
    %v648 = vunpack.c.l.b16 %v632
    %v649 = vunpack.c.l.b16 %v633
    %v650 = vunpack.c.l.b16 %v634
    %v651 = vunpack.c.l.b16 %v635
    %v652 = vpack.c.b16 %v645, %v644
    %v653 = vpack.c.b16 %v647, %v646
    %v654 = vpack.c.b16 %v649, %v648
    %v655 = vpack.c.b16 %v651, %v650
    %vm660 = vcmask 523264
    %v662 = vsel %vm660, %v626, 0
    %v665 = vsel %vm660, %v627, 0
    %667 = vmatprep.subr.bf16.mxu0 0
    %668 = vmatpush1.bf16.msra.mxu0 %v652
    %669 = vmatprep.subr.bf16.mxu0 0
    %670 = vmatpush1.bf16.msra.mxu0 %v653
    %671 = vmatprep.subr.bf16.mxu0 0
    %672 = vmatpush1.bf16.msra.mxu0 %v654
    %673 = vmatprep.subr.bf16.mxu0 0
    %674 = vmatpush1.bf16.msra.mxu0 %v655
    %675 = vmatprep.subr.bf16.mxu0 0
    %676 = vmatpush1.bf16.msra.mxu0 0
    %677 = vmatprep.subr.bf16.mxu0 0
    %678 = vmatpush1.bf16.msra.mxu0 0
    %679 = vmatprep.subr.bf16.mxu0 0
    %680 = vmatpush1.bf16.msra.mxu0 0
    %681 = vmatprep.subr.bf16.mxu0 0
    %682 = vmatpush1.bf16.msra.mxu0 0
    %683 = vmatprep.subr.bf16.mxu0 0
    %684 = vmatpush1.bf16.msra.mxu0 0
    %685 = vmatprep.subr.bf16.mxu0 0
    %686 = vmatpush1.bf16.msra.mxu0 0
    %687 = vmatprep.subr.bf16.mxu0 0
    %688 = vmatpush1.bf16.msra.mxu0 0
    %689 = vmatprep.subr.bf16.mxu0 0
    %690 = vmatpush1.bf16.msra.mxu0 0
    %691 = vmatprep.subr.bf16.mxu0 0
    %692 = vmatpush1.bf16.msra.mxu0 0
    %693 = vmatprep.subr.bf16.mxu0 0
    %694 = vmatpush1.bf16.msra.mxu0 0
    %695 = vmatprep.subr.bf16.mxu0 0
    %696 = vmatpush1.bf16.msra.mxu0 0
    %697 = vmatprep.subr.bf16.mxu0 0
    %698 = vmatpush1.bf16.msra.mxu0 0
    %699 = vmatprep.mubr.bf16.mxu0 0
    %700 = vmatmul.mubr.bf16.gmra.mrb[0].mxu0 %v662
    %v701 = vpop.f32.mrb[0].mxu0
    %v702 = vadd.f32 0.0, %v701
    %v703 = vpop.f32.mrb[0].mxu0
    %v704 = vpop.f32.mrb[0].mxu0
    %v705 = vadd.f32 0.0, %v704
    %v706 = vpop.f32.mrb[0].mxu0
    %707 = vmatprep.mubr.bf16.mxu0 0
    %708 = vmatmul.mubr.bf16.gmra.mrb[0].mxu0 %v665
    %v709 = vpop.f32.mrb[0].mxu0
    %v710 = vadd.f32 0.0, %v709
    %v711 = vpop.f32.mrb[0].mxu0
    %v712 = vpop.f32.mrb[0].mxu0
    %v713 = vpop.f32.mrb[0].mxu0
    %714 = vdwg.mxu0
    %v715 = vmax.f32 %v702, 0.0
    %v716 = vmax.f32 %v705, 0.0
    %v717 = vmax.f32 %v710, 0.0
    %v718 = vpack.c.bf16 %v716, %v715
    %v719 = vpack.c.bf16 %v717, %v717
    %v720 = vld [vmem:[%s4] sm:$0xf]
    %v721 = vld [vmem:[%s4 + $0x4] sm:$0xf]
    %v722 = vld [vmem:[%s4 + $0x8] sm:$0xf]
    %v723 = vld [vmem:[%s4 + $0xc] sm:$0xf]
    %v728 = vunpack.c.l.b16 %v720
    %v729 = vunpack.c.l.b16 %v721
    %v730 = vunpack.c.l.b16 %v722
    %v731 = vunpack.c.l.b16 %v723
    %v732 = vpack.c.b16 %v729, %v728
    %v733 = vpack.c.b16 %v731, %v730
    %vm736 = vcmask 261120
    %v738 = vsel %vm736, %v718, 0
    %v741 = vsel %vm736, %v719, 0
    %743 = vmatprep.subr.bf16.mxu0 0
    %744 = vmatpush1.bf16.msra.mxu0 %v732
    %745 = vmatprep.subr.bf16.mxu0 0
    %746 = vmatpush1.bf16.msra.mxu0 %v733
    %747 = vmatprep.subr.bf16.mxu0 0
    %748 = vmatpush1.bf16.msra.mxu0 0
    %749 = vmatprep.subr.bf16.mxu0 0
    %750 = vmatpush1.bf16.msra.mxu0 0
    %751 = vmatprep.subr.bf16.mxu0 0
    %752 = vmatpush1.bf16.msra.mxu0 0
    %753 = vmatprep.subr.bf16.mxu0 0
    %754 = vmatpush1.bf16.msra.mxu0 0
    %755 = vmatprep.subr.bf16.mxu0 0
    %756 = vmatpush1.bf16.msra.mxu0 0
    %757 = vmatprep.subr.bf16.mxu0 0
    %758 = vmatpush1.bf16.msra.mxu0 0
    %759 = vmatprep.subr.bf16.mxu0 0
    %760 = vmatpush1.bf16.msra.mxu0 0
    %761 = vmatprep.subr.bf16.mxu0 0
    %762 = vmatpush1.bf16.msra.mxu0 0
    %763 = vmatprep.subr.bf16.mxu0 0
    %764 = vmatpush1.bf16.msra.mxu0 0
    %765 = vmatprep.subr.bf16.mxu0 0
    %766 = vmatpush1.bf16.msra.mxu0 0
    %767 = vmatprep.subr.bf16.mxu0 0
    %768 = vmatpush1.bf16.msra.mxu0 0
    %769 = vmatprep.subr.bf16.mxu0 0
    %770 = vmatpush1.bf16.msra.mxu0 0
    %771 = vmatprep.subr.bf16.mxu0 0
    %772 = vmatpush1.bf16.msra.mxu0 0
    %773 = vmatprep.subr.bf16.mxu0 0
    %774 = vmatpush1.bf16.msra.mxu0 0
    %775 = vmatprep.mubr.bf16.mxu0 0
    %776 = vmatmul.mubr.bf16.gmra.mrb[0].mxu0 %v738
    %v777 = vpop.f32.mrb[0].mxu0
    %v778 = vadd.f32 0.0, %v777
    %v779 = vpop.f32.mrb[0].mxu0
    %v780 = vpop.f32.mrb[0].mxu0
    %v781 = vadd.f32 0.0, %v780
    %v782 = vpop.f32.mrb[0].mxu0
    %783 = vmatprep.mubr.bf16.mxu0 0
    %784 = vmatmul.mubr.bf16.gmra.mrb[0].mxu0 %v741
    %v785 = vpop.f32.mrb[0].mxu0
    %v786 = vadd.f32 0.0, %v785
    %v787 = vpop.f32.mrb[0].mxu0
    %v788 = vpop.f32.mrb[0].mxu0
    %v789 = vpop.f32.mrb[0].mxu0
    %790 = vdwg.mxu0
    %v791 = vmax.f32 %v778, 0.0
    %v792 = vmax.f32 %v781, 0.0
    %v793 = vmax.f32 %v786, 0.0
    %v794 = vadd.f32 %v613, %v791
    %v795 = vadd.f32 %v616, %v792
    %v796 = vadd.f32 %v621, %v793
    %v797 = vmul.f32 %v794, %v794
    %v798 = vmul.f32 %v795, %v795
    %v799 = vmul.f32 %v796, %v796
    %v800 = vsel %vm660, %v797, 0.0
    %801 = vadd.xlane.f32.xlu0 %v800
    %v802 = vpop.xlane.xlu0 %801
    %v803 = vsel %vm660, %v798, 0.0
    %804 = vadd.xlane.f32.xlu0 %v803
    %v805 = vpop.xlane.xlu0 %804
    %vm806 = vcmask 519168
    %v807 = vsel %vm806, %v799, 0.0
    %808 = vadd.xlane.f32.xlu0 %v807
    %v809 = vpop.xlane.xlu0 %808
    %v810 = vadd.f32 %v802, 1e-12
    %v811 = vadd.f32 %v805, 1e-12
    %v812 = vadd.f32 %v809, 1e-12
    %v813 = vrsqrt.pop %v810
    %v814 = vrsqrt.pop %v811
    %v815 = vrsqrt.pop %v812
    %v816 = vmul.f32 %v794, %v813
    %v817 = vmul.f32 %v795, %v814
    %v818 = vmul.f32 %v796, %v815
    %v819 = vpack.c.bf16 %v817, %v816
    %v820 = vpack.c.bf16 %v818, %v818
    %v821 = vld [vmem:[%s5] sm:$0xf]
    %v822 = vld [vmem:[%s5 + $0x4] sm:$0xf]
    %v823 = vld [vmem:[%s5 + $0x8] sm:$0xf]
    %v824 = vld [vmem:[%s5 + $0xc] sm:$0xf]
    %v825 = vld [vmem:[%s5 + $0x10] sm:$0xf]
    %v826 = vld [vmem:[%s5 + $0x14] sm:$0xf]
    %v827 = vld [vmem:[%s5 + $0x18] sm:$0xf]
    %v828 = vld [vmem:[%s5 + $0x1c] sm:$0xf]
    %v837 = vunpack.c.l.b16 %v821
    %v838 = vunpack.c.l.b16 %v822
    %v839 = vunpack.c.l.b16 %v823
    %v840 = vunpack.c.l.b16 %v824
    %v841 = vunpack.c.l.b16 %v825
    %v842 = vunpack.c.l.b16 %v826
    %v843 = vunpack.c.l.b16 %v827
    %v844 = vunpack.c.l.b16 %v828
    %v845 = vpack.c.b16 %v838, %v837
    %v846 = vpack.c.b16 %v840, %v839
    %v847 = vpack.c.b16 %v842, %v841
    %v848 = vpack.c.b16 %v844, %v843
    %v854 = vsel %vm660, %v819, 0
    %v857 = vsel %vm660, %v820, 0
    %859 = vmatprep.subr.bf16.mxu0 0
    %860 = vmatpush1.bf16.msra.mxu0 %v845
    %861 = vmatprep.subr.bf16.mxu0 0
    %862 = vmatpush1.bf16.msra.mxu0 %v846
    %863 = vmatprep.subr.bf16.mxu0 0
    %864 = vmatpush1.bf16.msra.mxu0 %v847
    %865 = vmatprep.subr.bf16.mxu0 0
    %866 = vmatpush1.bf16.msra.mxu0 %v848
    %867 = vmatprep.subr.bf16.mxu0 0
    %868 = vmatpush1.bf16.msra.mxu0 0
    %869 = vmatprep.subr.bf16.mxu0 0
    %870 = vmatpush1.bf16.msra.mxu0 0
    %871 = vmatprep.subr.bf16.mxu0 0
    %872 = vmatpush1.bf16.msra.mxu0 0
    %873 = vmatprep.subr.bf16.mxu0 0
    %874 = vmatpush1.bf16.msra.mxu0 0
    %875 = vmatprep.subr.bf16.mxu0 0
    %876 = vmatpush1.bf16.msra.mxu0 0
    %877 = vmatprep.subr.bf16.mxu0 0
    %878 = vmatpush1.bf16.msra.mxu0 0
    %879 = vmatprep.subr.bf16.mxu0 0
    %880 = vmatpush1.bf16.msra.mxu0 0
    %881 = vmatprep.subr.bf16.mxu0 0
    %882 = vmatpush1.bf16.msra.mxu0 0
    %883 = vmatprep.subr.bf16.mxu0 0
    %884 = vmatpush1.bf16.msra.mxu0 0
    %885 = vmatprep.subr.bf16.mxu0 0
    %886 = vmatpush1.bf16.msra.mxu0 0
    %887 = vmatprep.subr.bf16.mxu0 0
    %888 = vmatpush1.bf16.msra.mxu0 0
    %889 = vmatprep.subr.bf16.mxu0 0
    %890 = vmatpush1.bf16.msra.mxu0 0
    %891 = vmatprep.mubr.bf16.mxu0 0
    %892 = vmatmul.mubr.bf16.gmra.mrb[0].mxu0 %v854
    %v893 = vpop.f32.mrb[0].mxu0
    %v894 = vadd.f32 0.0, %v893
    %v895 = vpop.f32.mrb[0].mxu0
    %v896 = vpop.f32.mrb[0].mxu0
    %v897 = vadd.f32 0.0, %v896
    %v898 = vpop.f32.mrb[0].mxu0
    %899 = vmatprep.mubr.bf16.mxu0 0
    %900 = vmatmul.mubr.bf16.gmra.mrb[0].mxu0 %v857
    %v901 = vpop.f32.mrb[0].mxu0
    %v902 = vadd.f32 0.0, %v901
    %v903 = vpop.f32.mrb[0].mxu0
    %v904 = vpop.f32.mrb[0].mxu0
    %v905 = vpop.f32.mrb[0].mxu0
    %906 = vdwg.mxu0
    %v907 = vmul.f32 %v894, 1.442695
    %v908 = vpow.pop %v907
    %v909 = vmul.f32 %v897, 1.442695
    %v910 = vpow.pop %v909
    %v911 = vmul.f32 %v902, 1.442695
    %v912 = vpow.pop %v911
    %v913 = vpack.c.bf16 %v910, %v908
    %v914 = vpack.c.bf16 %v912, %v912
    %v915 = vld [vmem:[%s6] sm:$0xf]
    %v916 = vld [vmem:[%s6 + $0x4] sm:$0xf]
    %v917 = vld [vmem:[%s6 + $0x8] sm:$0x3]
    %v921 = vunpack.c.l.b16 %v915
    %v922 = vunpack.c.l.b16 %v916
    %v923 = vunpack.c.l.b16 %v917
    %v924 = vpack.c.b16 %v922, %v921
    %v925 = vpack.c.b16 %v923, %v923
    %vm927 = vcmask 162816
    %v929 = vsel %vm927, %v913, 0
    %v932 = vsel %vm927, %v914, 0
    %vm934 = vcmask 1041408
    %v936 = vsel %vm934, %v925, 0
    %938 = vmatprep.subr.bf16.mxu0 0
    %939 = vmatpush1.bf16.msra.mxu0 %v924
    %940 = vmatprep.subr.bf16.mxu0 0
    %941 = vmatpush1.bf16.msra.mxu0 %v936
    %942 = vmatprep.subr.bf16.mxu0 0
    %943 = vmatpush1.bf16.msra.mxu0 0
    %944 = vmatprep.subr.bf16.mxu0 0
    %945 = vmatpush1.bf16.msra.mxu0 0
    %946 = vmatprep.subr.bf16.mxu0 0
    %947 = vmatpush1.bf16.msra.mxu0 0
    %948 = vmatprep.subr.bf16.mxu0 0
    %949 = vmatpush1.bf16.msra.mxu0 0
    %950 = vmatprep.subr.bf16.mxu0 0
    %951 = vmatpush1.bf16.msra.mxu0 0
    %952 = vmatprep.subr.bf16.mxu0 0
    %953 = vmatpush1.bf16.msra.mxu0 0
    %954 = vmatprep.subr.bf16.mxu0 0
    %955 = vmatpush1.bf16.msra.mxu0 0
    %956 = vmatprep.subr.bf16.mxu0 0
    %957 = vmatpush1.bf16.msra.mxu0 0
    %958 = vmatprep.subr.bf16.mxu0 0
    %959 = vmatpush1.bf16.msra.mxu0 0
    %960 = vmatprep.subr.bf16.mxu0 0
    %961 = vmatpush1.bf16.msra.mxu0 0
    %962 = vmatprep.subr.bf16.mxu0 0
    %963 = vmatpush1.bf16.msra.mxu0 0
    %964 = vmatprep.subr.bf16.mxu0 0
    %965 = vmatpush1.bf16.msra.mxu0 0
    %966 = vmatprep.subr.bf16.mxu0 0
    %967 = vmatpush1.bf16.msra.mxu0 0
    %968 = vmatprep.subr.bf16.mxu0 0
    %969 = vmatpush1.bf16.msra.mxu0 0
    %970 = vmatprep.mubr.bf16.mxu0 0
    %971 = vmatmul.mubr.bf16.gmra.mrb[0].mxu0 %v929
    %v972 = vpop.f32.mrb[0].mxu0
    %v973 = vadd.f32 0.0, %v972
    %v974 = vpop.f32.mrb[0].mxu0
    %v975 = vpop.f32.mrb[0].mxu0
    %v976 = vadd.f32 0.0, %v975
    %v977 = vpop.f32.mrb[0].mxu0
    %978 = vmatprep.mubr.bf16.mxu0 0
    %979 = vmatmul.mubr.bf16.gmra.mrb[0].mxu0 %v932
    %v980 = vpop.f32.mrb[0].mxu0
    %v981 = vadd.f32 0.0, %v980
    %v982 = vpop.f32.mrb[0].mxu0
    %v983 = vpop.f32.mrb[0].mxu0
    %v984 = vpop.f32.mrb[0].mxu0
    %985 = vdwg.mxu0
    %v986 = vrcp.pop %v973
    %v987 = vrcp.pop %v976
    %v988 = vrcp.pop %v981
    %v989 = vmul.f32 %v973, %v986
    %v990 = vmul.f32 %v976, %v987
    %v991 = vmul.f32 %v981, %v988
    %v992 = vsub.f32 2.0, %v989
    %v993 = vsub.f32 2.0, %v990
    %v994 = vsub.f32 2.0, %v991
    %v995 = vmul.f32 %v986, %v992
    %v996 = vmul.f32 %v987, %v993
    %v997 = vmul.f32 %v988, %v994
    %1001 = vrot.lane.b32.xlu0 %v995, 4
    %v1002 = vpop.permute.xlu0 %1001
    %1003 = vrot.lane.b32.xlu0 %v996, 4
    %v1004 = vpop.permute.xlu0 %1003
    %1005 = vrot.lane.b32.xlu0 %v997, 4
    %v1006 = vpop.permute.xlu0 %1005
    %v1010 = vmul.f32 %v973, %v1002
    %v1011 = vmul.f32 %v976, %v1004
    %v1012 = vmul.f32 %v981, %v1006
    %1016 = vrot.lane.b32.xlu0 %v1010, 124
    %v1017 = vpop.permute.xlu0 %1016
    %1018 = vrot.lane.b32.xlu0 %v1011, 124
    %v1019 = vpop.permute.xlu0 %1018
    %1020 = vrot.lane.b32.xlu0 %v1012, 124
    %v1021 = vpop.permute.xlu0 %1020
    %vm1025 = vcmask 31744
    %v1026 = vsel %vm1025, %v1017, 0.0
    %1027 = vadd.xlane.f32.xlu0 %v1026
    %v1028 = vpop.xlane.xlu0 %1027
    %v1029 = vsel %vm1025, %v1019, 0.0
    %1030 = vadd.xlane.f32.xlu0 %v1029
    %v1031 = vpop.xlane.xlu0 %1030
    %vm1032 = vcmask 27648
    %v1033 = vsel %vm1032, %v1021, 0.0
    %1034 = vadd.xlane.f32.xlu0 %v1033
    %v1035 = vpop.xlane.xlu0 %1034
    %v1036 = vld [vmem:[%s7] sm:$0xff]
    %v1037 = vld [vmem:[%s7 + $0x8] sm:$0xff]
    %v1038 = vld [vmem:[%s7 + $0x10] sm:$0xf]
    %v1039 = vmul.f32 %v1028, %v1036
    %v1040 = vmul.f32 %v1031, %v1037
    %v1041 = vmul.f32 %v1035, %v1038
    %vm1042 = vcmask 15360
    %v1043 = vsel %vm1042, %v1039, 0.0
    %v1044 = vsel %vm1042, %v1040, 0.0
    %v1045 = vadd.f32 %v1043, %v1044
    %vm1046 = vcmask 11264
    %v1047 = vsel %vm1046, %v1041, 0.0
    %v1048 = vadd.f32 %v1045, %v1047
    %v1049 = vrot.slane %v1048, 4
    %v1050 = vadd.f32 %v1048, %v1049
    %v1051 = vrot.slane %v1050, 2
    %v1052 = vadd.f32 %v1050, %v1051
    %v1053 = vrot.slane %v1052, 1
    %v1054 = vadd.f32 %v1052, %v1053
    %vm1055 = vcmask 8192
    %1056 = vst.msk [vmem:[#allocation2] sm:$0x1] %vm1055, %v1054
    // Predicated region
    $region34: #{random_crop_test.1} parent=1 // pred_check
      _
    $region35: #{random_crop_test.1} parent=1 // pred_check_branch
      %1058 = sbr.rel (0) target = $region37
    $region36: #{random_crop_test.1} parent=1 // pred_region
      %s1060 = ssub.s32 16, 16
      %1061 = vsyncadd [#allocation3], %s1060
      %s1063 = sshll.u32 [#allocation2], 4
      %s1064 = int_to_ptr.vmem [resolvable:$true] %s1063
      %1066 = dma.vmem_to_hbm [thread:$0]  %s1064, 16, %s8, [#allocation3]
    $region37: #{random_crop_test.1} parent=1 // pred_fallthru
      _
    // Predicated region
    $region38: #{random_crop_test.1} parent=1 // pred_check
      _
    $region39: #{random_crop_test.1} parent=1 // pred_check_branch
      %1068 = sbr.rel (0) target = $region41
    $region40: #{random_crop_test.1} parent=1 // pred_region
      %1069 = dma.done [#allocation3], 16
    $region41: #{random_crop_test.1} parent=1 // pred_fallthru
      _
    %1070 = vsyncpa [#allocation3], 1

</llo_original>
